<compile_context>
chip_gen: v6e
topology: v6e:2x2x1
jax: 0.10.0
libtpu: 0.0.40
codegen_flags: <defaults>
</compile_context>

<pallas_src>
import math

import jax
import jax.numpy as jnp
from jax.experimental import pallas as pl
from jax.experimental.pallas import tpu as pltpu

COS_EPS = 1e-6
_VMEM_INPUT_BUDGET = 24 * 1024 * 1024  # double-buffered q + s tiles, f32 bound


def _cos_sqerr_kernel(q_ref, s_ref, lbl_ref, score_ref, sqerr_ref):
    """One (batch-tile, lane-tile) block.

    q_ref, s_ref : (bt, C, T)  feature blocks; C on sublanes, positions on lanes
    lbl_ref      : (bt, 1, T)  regression targets
    score_ref    : (bt, 1, T)  cosine similarity
    sqerr_ref    : (bt, 1, T)  per-position squared error
    """
    q = q_ref[...].astype(jnp.float32)
    s = s_ref[...].astype(jnp.float32)

    dot = jnp.sum(q * s, axis=1, keepdims=True)   # (bt, 1, T)
    q2 = jnp.sum(q * q, axis=1, keepdims=True)
    s2 = jnp.sum(s * s, axis=1, keepdims=True)

    # torch CosineSimilarity(dim=1, eps): dot / max(||q||*||s||, eps)
    #   == dot * rsqrt(max(q2*s2, eps^2))  (sqrt is monotone, eps > 0)
    inv = jax.lax.rsqrt(jnp.maximum(q2 * s2, jnp.float32(COS_EPS * COS_EPS)))
    cos = dot * inv

    score_ref[...] = cos
    diff = cos - lbl_ref[...].astype(jnp.float32)
    sqerr_ref[...] = diff * diff


def _round_up(x, m):
    return ((x + m - 1) // m) * m


def cosine_sim_and_sqerr(q3, s3, lbl2):
    """q3, s3: (B, C, HW); lbl2: (B, HW).

    Returns (score (B, HW), sqerr (B, HW)) in float32.
    """
    b, c, hw = q3.shape
    lbl3 = lbl2.reshape(b, 1, hw)
    per_item = 4 * c * hw * 4  # q + s, double-buffered, f32 upper bound

    if per_item <= _VMEM_INPUT_BUDGET:
        # ---- Path A: whole H*W per grid step, batch-blocked, no padding. ----
        bt = 1
        for d in range(b, 0, -1):
            if b % d == 0 and per_item * d <= _VMEM_INPUT_BUDGET:
                bt = d
                break
        grid = (b // bt,)
        score3, sqerr3 = pl.pallas_call(
            _cos_sqerr_kernel,
            out_shape=(
                jax.ShapeDtypeStruct((b, 1, hw), jnp.float32),
                jax.ShapeDtypeStruct((b, 1, hw), jnp.float32),
            ),
            grid_spec=pltpu.PrefetchScalarGridSpec(
                num_scalar_prefetch=0,
                grid=grid,
                in_specs=[
                    pl.BlockSpec((bt, c, hw), lambda i: (i, 0, 0)),
                    pl.BlockSpec((bt, c, hw), lambda i: (i, 0, 0)),
                    pl.BlockSpec((bt, 1, hw), lambda i: (i, 0, 0)),
                ],
                out_specs=[
                    pl.BlockSpec((bt, 1, hw), lambda i: (i, 0, 0)),
                    pl.BlockSpec((bt, 1, hw), lambda i: (i, 0, 0)),
                ],
            ),
            compiler_params=pltpu.CompilerParams(
                dimension_semantics=("parallel",),
                vmem_limit_bytes=40 * 1024 * 1024,
            ),
        )(q3, s3, lbl3)
        return score3[:, 0, :], sqerr3[:, 0, :]

    # ---- Path B: huge per-item features -> tile H*W (lane) axis. ----
    # Lane tiles are multiples of 128 (lane-dense stores) chosen to divide the
    # 128-rounded position count, so the wrapper pad is at most 127 columns.
    hw_pad = _round_up(hw, 128)
    t_max = max(128, (_VMEM_INPUT_BUDGET // (16 * c)) // 128 * 128)
    hw_tile = 128
    for k in range(min(hw_pad, t_max) // 128, 0, -1):
        if (hw_pad // 128) % k == 0:
            hw_tile = k * 128
            break

    if hw_pad != hw:
        pad = hw_pad - hw
        q3 = jnp.pad(q3, ((0, 0), (0, 0), (0, pad)))
        s3 = jnp.pad(s3, ((0, 0), (0, 0), (0, pad)))
        lbl3 = jnp.pad(lbl3, ((0, 0), (0, 0), (0, pad)))

    grid = (b, hw_pad // hw_tile)
    score3, sqerr3 = pl.pallas_call(
        _cos_sqerr_kernel,
        out_shape=(
            jax.ShapeDtypeStruct((b, 1, hw_pad), jnp.float32),
            jax.ShapeDtypeStruct((b, 1, hw_pad), jnp.float32),
        ),
        grid_spec=pltpu.PrefetchScalarGridSpec(
            num_scalar_prefetch=0,
            grid=grid,
            in_specs=[
                pl.BlockSpec((1, c, hw_tile), lambda i, j: (i, 0, j)),
                pl.BlockSpec((1, c, hw_tile), lambda i, j: (i, 0, j)),
                pl.BlockSpec((1, 1, hw_tile), lambda i, j: (i, 0, j)),
            ],
            out_specs=[
                pl.BlockSpec((1, 1, hw_tile), lambda i, j: (i, 0, j)),
                pl.BlockSpec((1, 1, hw_tile), lambda i, j: (i, 0, j)),
            ],
        ),
        compiler_params=pltpu.CompilerParams(
            dimension_semantics=("parallel", "parallel"),
            vmem_limit_bytes=40 * 1024 * 1024,
        ),
    )(q3, s3, lbl3)

    # drop padded positions (padded features give cos=0, sliced off here)
    return score3[:, 0, :hw], sqerr3[:, 0, :hw]


class ModelTemplateJAX:
    """JAX/Pallas port of the computable pieces of ModelTemplate."""

    def __init__(self, input_channel):
        self.input_channel = input_channel

    def extract_features(self, support_feat, query_feat):
        """is_feature=True path: reshape flat features to (B, C, H, W)."""
        hidden_dim = support_feat.shape[-1]
        seq_len = hidden_dim // self.input_channel
        h = w = int(math.sqrt(seq_len))
        s = support_feat.reshape(support_feat.shape[0], self.input_channel, h, w)
        q = query_feat.reshape(query_feat.shape[0], self.input_channel, h, w)
        return s, q

    def get_loss_or_score(self, s_embedding, q_embedding, label, mode):
        """s/q_embedding: (B, C, H, W) NCHW; label: (B, H, W) (train mode)."""
        b, c, h, w = q_embedding.shape
        hw = h * w
        # NCHW kept as-is: (B, C, H*W) view, C on sublanes, positions on lanes.
        q3 = q_embedding.reshape(b, c, hw)
        s3 = s_embedding.reshape(b, c, hw)

        if mode == "train":
            lbl2 = label.reshape(b, hw).astype(jnp.float32)
        else:
            lbl2 = jnp.zeros((b, hw), jnp.float32)

        score2, sqerr2 = cosine_sim_and_sqerr(q3, s3, lbl2)

        if mode == "train":
            # MSELoss (mean reduction) over the B*H*W cosine map
            return jnp.sum(sqerr2) / jnp.float32(b * hw)
        return score2.reshape(b, h, w)


def _reference(q_emb, s_emb, label):
    """Plain-JAX reference for the torch semantics (sanity check)."""
    dot = jnp.sum(q_emb * s_emb, axis=1)
    qn = jnp.sqrt(jnp.sum(q_emb * q_emb, axis=1))
    sn = jnp.sqrt(jnp.sum(s_emb * s_emb, axis=1))
    cos = dot / jnp.maximum(qn * sn, COS_EPS)
    mse = jnp.mean((cos - label) ** 2)
    return cos, mse


if __name__ == "__main__":
    key = jax.random.PRNGKey(0)
    k1, k2, k3 = jax.random.split(key, 3)

    # Small shapes consistent with extract_features:
    #   input_channel C=64, spatial h=w=4  ->  flat feature dim = 64*4*4 = 1024
    B, C, H, W = 2, 64, 4, 4
    flat = C * H * W

    support_feat = jax.random.normal(k1, (B, flat), jnp.float32)
    query_feat = jax.random.normal(k2, (B, flat), jnp.float32)
    label = jax.random.uniform(k3, (B, H, W), jnp.float32)

    model = ModelTemplateJAX(input_channel=C)
    s_emb, q_emb = model.extract_features(support_feat, query_feat)

    # train mode -> MSE loss between cosine-similarity map and label
    loss = model.get_loss_or_score(s_emb, q_emb, label, mode="train")
    # eval mode -> cosine-similarity score map
    score = model.get_loss_or_score(s_emb, q_emb, label, mode="eval")

    loss = jax.block_until_ready(loss)
    score = jax.block_until_ready(score)

    ref_cos, ref_mse = _reference(q_emb, s_emb, label)
    assert jnp.allclose(score, ref_cos, atol=1e-5, rtol=1e-5)
    assert jnp.allclose(loss, ref_mse, atol=1e-5, rtol=1e-5)

    print("KERNEL_OK")
</pallas_src>

<mosaic_0001>
module attributes {stable_mosaic.version = 11 : i64} {
  func.func @_cos_sqerr_kernel(%arg0: i32, %arg1: memref<2x64x16xf32, #tpu.memory_space<vmem>>, %arg2: memref<2x64x16xf32, #tpu.memory_space<vmem>>, %arg3: memref<2x1x16xf32, #tpu.memory_space<vmem>>, %arg4: memref<2x1x16xf32, #tpu.memory_space<vmem>>, %arg5: memref<2x1x16xf32, #tpu.memory_space<vmem>>) attributes {dimension_semantics = [#tpu.dimension_semantics<parallel>], iteration_bounds = array<i64: 1>, scalar_prefetch = 0 : i64, scratch_operands = 0 : i64, tpu.core_type = #tpu.core_type<tc>, window_params = [{transform_indices = @transform_0, window_bounds = array<i64: 2, 64, 16>}, {transform_indices = @transform_1, window_bounds = array<i64: 2, 64, 16>}, {transform_indices = @transform_2, window_bounds = array<i64: 2, 1, 16>}, {transform_indices = @transform_3, window_bounds = array<i64: 2, 1, 16>}, {transform_indices = @transform_4, window_bounds = array<i64: 2, 1, 16>}]} {
    %c0 = arith.constant 0 : index
    %c0_0 = arith.constant 0 : index
    %c0_1 = arith.constant 0 : index
    %0 = vector.load %arg1[%c0, %c0_0, %c0_1] : memref<2x64x16xf32, #tpu.memory_space<vmem>>, vector<2x64x16xf32>
    %c0_2 = arith.constant 0 : index
    %c0_3 = arith.constant 0 : index
    %c0_4 = arith.constant 0 : index
    %1 = vector.load %arg2[%c0_2, %c0_3, %c0_4] : memref<2x64x16xf32, #tpu.memory_space<vmem>>, vector<2x64x16xf32>
    %2 = arith.mulf %0, %1 : vector<2x64x16xf32>
    %cst = arith.constant dense<0.000000e+00> : vector<2x16xf32>
    %3 = vector.multi_reduction <add>, %2, %cst [1] : vector<2x64x16xf32> to vector<2x16xf32>
    %4 = vector.shape_cast %3 : vector<2x16xf32> to vector<2x1x16xf32>
    %5 = arith.mulf %0, %0 : vector<2x64x16xf32>
    %cst_5 = arith.constant dense<0.000000e+00> : vector<2x16xf32>
    %6 = vector.multi_reduction <add>, %5, %cst_5 [1] : vector<2x64x16xf32> to vector<2x16xf32>
    %7 = vector.shape_cast %6 : vector<2x16xf32> to vector<2x1x16xf32>
    %8 = arith.mulf %1, %1 : vector<2x64x16xf32>
    %cst_6 = arith.constant dense<0.000000e+00> : vector<2x16xf32>
    %9 = vector.multi_reduction <add>, %8, %cst_6 [1] : vector<2x64x16xf32> to vector<2x16xf32>
    %10 = vector.shape_cast %9 : vector<2x16xf32> to vector<2x1x16xf32>
    %11 = arith.mulf %7, %10 : vector<2x1x16xf32>
    %cst_7 = arith.constant 9.99999996E-13 : f32
    %12 = vector.broadcast %cst_7 : f32 to vector<2x1x16xf32>
    %13 = arith.maximumf %11, %12 : vector<2x1x16xf32>
    %14 = math.rsqrt %13 : vector<2x1x16xf32>
    %15 = arith.mulf %4, %14 : vector<2x1x16xf32>
    %c0_8 = arith.constant 0 : index
    %c0_9 = arith.constant 0 : index
    %c0_10 = arith.constant 0 : index
    %16 = vector.load %arg4[%c0_8, %c0_9, %c0_10] : memref<2x1x16xf32, #tpu.memory_space<vmem>>, vector<2x1x16xf32>
    tpu.vector_store %arg4[%c0_8, %c0_9, %c0_10], %15 {strides = array<i32>} : memref<2x1x16xf32, #tpu.memory_space<vmem>>, vector<2x1x16xf32>,
    %c0_11 = arith.constant 0 : index
    %c0_12 = arith.constant 0 : index
    %c0_13 = arith.constant 0 : index
    %17 = vector.load %arg3[%c0_11, %c0_12, %c0_13] : memref<2x1x16xf32, #tpu.memory_space<vmem>>, vector<2x1x16xf32>
    %18 = arith.subf %15, %17 : vector<2x1x16xf32>
    %19 = arith.mulf %18, %18 : vector<2x1x16xf32>
    %c0_14 = arith.constant 0 : index
    %c0_15 = arith.constant 0 : index
    %c0_16 = arith.constant 0 : index
    %20 = vector.load %arg5[%c0_14, %c0_15, %c0_16] : memref<2x1x16xf32, #tpu.memory_space<vmem>>, vector<2x1x16xf32>
    tpu.vector_store %arg5[%c0_14, %c0_15, %c0_16], %19 {strides = array<i32>} : memref<2x1x16xf32, #tpu.memory_space<vmem>>, vector<2x1x16xf32>,
    return
  }
  func.func @transform_0(%arg0: i32) -> (i32, i32, i32) {
    %c0_i32 = arith.constant 0 : i32
    %c0_i32_0 = arith.constant 0 : i32
    %c0_i32_1 = arith.constant 0 : i32
    return %arg0, %c0_i32, %c0_i32_0 : i32, i32, i32
  }
  func.func @transform_1(%arg0: i32) -> (i32, i32, i32) {
    %c0_i32 = arith.constant 0 : i32
    %c0_i32_0 = arith.constant 0 : i32
    %c0_i32_1 = arith.constant 0 : i32
    return %arg0, %c0_i32, %c0_i32_0 : i32, i32, i32
  }
  func.func @transform_2(%arg0: i32) -> (i32, i32, i32) {
    %c0_i32 = arith.constant 0 : i32
    %c0_i32_0 = arith.constant 0 : i32
    %c0_i32_1 = arith.constant 0 : i32
    return %arg0, %c0_i32, %c0_i32_0 : i32, i32, i32
  }
  func.func @transform_3(%arg0: i32) -> (i32, i32, i32) {
    %c0_i32 = arith.constant 0 : i32
    %c0_i32_0 = arith.constant 0 : i32
    %c0_i32_1 = arith.constant 0 : i32
    return %arg0, %c0_i32, %c0_i32_0 : i32, i32, i32
  }
  func.func @transform_4(%arg0: i32) -> (i32, i32, i32) {
    %c0_i32 = arith.constant 0 : i32
    %c0_i32_0 = arith.constant 0 : i32
    %c0_i32_1 = arith.constant 0 : i32
    return %arg0, %c0_i32, %c0_i32_0 : i32, i32, i32
  }
}

</mosaic_0001>

<llo_original>
// kernel: tpu_custom_call.1
$region0: #{tpu_custom_call.1}
  #allocation0 [shape = 'u32[]', space=smem, size = 0x4, offset = 0x4, fixed_abs, tag = 'smem constant byte address 0x4 - core index']
  #allocation1 [shape = 'u32[144,128]{1,0:T(1,128)}', space=vmem, size = 0x12000, scoped, tag = 'internal scratch']
  %s0 = inlined_call_operand.vmem [shape: f32[2,64,16], index: 0, kind: input, shape index: {}]
  %s1 = inlined_call_operand.vmem [shape: f32[2,64,16], index: 1, kind: input, shape index: {}]
  %s2 = inlined_call_operand.vmem [shape: f32[2,1,16], index: 2, kind: input, shape index: {}]
  %s3 = inlined_call_operand.hbm [shape: f32[2,1,16], index: 3, kind: output, shape index: {0}]
  %s4 = inlined_call_operand.hbm [shape: f32[2,1,16], index: 4, kind: output, shape index: {1}]
  %5 = xla_tuple %s3, %s4
  %s6 = sld [smem:[#allocation0]]
  $region30: #{tpu_custom_call.1} parent=0
    _
  %s8 = ssub.s32 1, %s6
  %s9 = scalar_select 0, %s8, %s6
  $region1: #{tpu_custom_call.1} parent=0
    #allocation2 [shape = 'u8[1024]{0}', space=vmem, size = 0x400, scoped, tag = 'output window, operand 0, single buffered']
    #allocation3 [shape = 's32[1]{0}', space=sflag, size = 0x4, scoped, tag = 'scoped memory for tpu_custom_call.1']
    #allocation4 [shape = 'u8[1024]{0}', space=vmem, size = 0x400, scoped, tag = 'output window, operand 1, single buffered']
    #allocation5 [shape = 's32[1]{0}', space=sflag, size = 0x4, scoped, tag = 'scoped memory for tpu_custom_call.1']
    %10 = vsyncpa [#allocation3], 0
    %11 = vsyncpa [#allocation5], 0
    // Predicated region
    $region2: #{tpu_custom_call.1} parent=1 // pred_check
      _
    $region3: #{tpu_custom_call.1} parent=1 // pred_check_branch
      %13 = sbr.rel (0) target = $region5
    $region4: #{tpu_custom_call.1} parent=1 // pred_region
      _
    $region5: #{tpu_custom_call.1} parent=1 // pred_fallthru
      _
    // Predicated region
    $region6: #{tpu_custom_call.1} parent=1 // pred_check
      _
    $region7: #{tpu_custom_call.1} parent=1 // pred_check_branch
      %15 = sbr.rel (0) target = $region9
    $region8: #{tpu_custom_call.1} parent=1 // pred_region
      _
    $region9: #{tpu_custom_call.1} parent=1 // pred_fallthru
      _
    // Predicated region
    $region10: #{tpu_custom_call.1} parent=1 // pred_check
      _
    $region11: #{tpu_custom_call.1} parent=1 // pred_check_branch
      %17 = sbr.rel (0) target = $region13
    $region12: #{tpu_custom_call.1} parent=1 // pred_region
      _
    $region13: #{tpu_custom_call.1} parent=1 // pred_fallthru
      _
    %v18 = vld [vmem:[%s0] sm:$0xff]
    %v19 = vld [vmem:[%s0 + $0x8] sm:$0xff]
    %v20 = vld [vmem:[%s0 + $0x10] sm:$0xff]
    %v21 = vld [vmem:[%s0 + $0x18] sm:$0xff]
    %v22 = vld [vmem:[%s0 + $0x20] sm:$0xff]
    %v23 = vld [vmem:[%s0 + $0x28] sm:$0xff]
    %v24 = vld [vmem:[%s0 + $0x30] sm:$0xff]
    %v25 = vld [vmem:[%s0 + $0x38] sm:$0xff]
    %v26 = vld [vmem:[%s0 + $0x40] sm:$0xff]
    %v27 = vld [vmem:[%s0 + $0x48] sm:$0xff]
    %v28 = vld [vmem:[%s0 + $0x50] sm:$0xff]
    %v29 = vld [vmem:[%s0 + $0x58] sm:$0xff]
    %v30 = vld [vmem:[%s0 + $0x60] sm:$0xff]
    %v31 = vld [vmem:[%s0 + $0x68] sm:$0xff]
    %v32 = vld [vmem:[%s0 + $0x70] sm:$0xff]
    %v33 = vld [vmem:[%s0 + $0x78] sm:$0xff]
    %v34 = vld [vmem:[%s1] sm:$0xff]
    %v35 = vld [vmem:[%s1 + $0x8] sm:$0xff]
    %v36 = vld [vmem:[%s1 + $0x10] sm:$0xff]
    %v37 = vld [vmem:[%s1 + $0x18] sm:$0xff]
    %v38 = vld [vmem:[%s1 + $0x20] sm:$0xff]
    %v39 = vld [vmem:[%s1 + $0x28] sm:$0xff]
    %v40 = vld [vmem:[%s1 + $0x30] sm:$0xff]
    %v41 = vld [vmem:[%s1 + $0x38] sm:$0xff]
    %v42 = vld [vmem:[%s1 + $0x40] sm:$0xff]
    %v43 = vld [vmem:[%s1 + $0x48] sm:$0xff]
    %v44 = vld [vmem:[%s1 + $0x50] sm:$0xff]
    %v45 = vld [vmem:[%s1 + $0x58] sm:$0xff]
    %v46 = vld [vmem:[%s1 + $0x60] sm:$0xff]
    %v47 = vld [vmem:[%s1 + $0x68] sm:$0xff]
    %v48 = vld [vmem:[%s1 + $0x70] sm:$0xff]
    %v49 = vld [vmem:[%s1 + $0x78] sm:$0xff]
    %v50 = vmul.f32 %v18, %v34
    %v51 = vmul.f32 %v19, %v35
    %v52 = vmul.f32 %v20, %v36
    %v53 = vmul.f32 %v21, %v37
    %v54 = vmul.f32 %v22, %v38
    %v55 = vmul.f32 %v23, %v39
    %v56 = vmul.f32 %v24, %v40
    %v57 = vmul.f32 %v25, %v41
    %v58 = vmul.f32 %v26, %v42
    %v59 = vmul.f32 %v27, %v43
    %v60 = vmul.f32 %v28, %v44
    %v61 = vmul.f32 %v29, %v45
    %v62 = vmul.f32 %v30, %v46
    %v63 = vmul.f32 %v31, %v47
    %v64 = vmul.f32 %v32, %v48
    %v65 = vmul.f32 %v33, %v49
    %vm66 = vcmask 130048
    %v67 = vsel %vm66, %v50, 0.0
    %v68 = vsel %vm66, %v51, 0.0
    %v69 = vadd.f32 %v67, %v68
    %v70 = vsel %vm66, %v52, 0.0
    %v71 = vadd.f32 %v69, %v70
    %v72 = vsel %vm66, %v53, 0.0
    %v73 = vadd.f32 %v71, %v72
    %v74 = vsel %vm66, %v54, 0.0
    %v75 = vadd.f32 %v73, %v74
    %v76 = vsel %vm66, %v55, 0.0
    %v77 = vadd.f32 %v75, %v76
    %v78 = vsel %vm66, %v56, 0.0
    %v79 = vadd.f32 %v77, %v78
    %v80 = vsel %vm66, %v57, 0.0
    %v81 = vadd.f32 %v79, %v80
    %v82 = vrot.slane %v81, 4
    %v83 = vadd.f32 %v81, %v82
    %v84 = vrot.slane %v83, 2
    %v85 = vadd.f32 %v83, %v84
    %v86 = vrot.slane %v85, 1
    %v87 = vadd.f32 %v85, %v86
    %v88 = vsel %vm66, %v58, 0.0
    %v89 = vsel %vm66, %v59, 0.0
    %v90 = vadd.f32 %v88, %v89
    %v91 = vsel %vm66, %v60, 0.0
    %v92 = vadd.f32 %v90, %v91
    %v93 = vsel %vm66, %v61, 0.0
    %v94 = vadd.f32 %v92, %v93
    %v95 = vsel %vm66, %v62, 0.0
    %v96 = vadd.f32 %v94, %v95
    %v97 = vsel %vm66, %v63, 0.0
    %v98 = vadd.f32 %v96, %v97
    %v99 = vsel %vm66, %v64, 0.0
    %v100 = vadd.f32 %v98, %v99
    %v101 = vsel %vm66, %v65, 0.0
    %v102 = vadd.f32 %v100, %v101
    %v103 = vrot.slane %v102, 4
    %v104 = vadd.f32 %v102, %v103
    %v105 = vrot.slane %v104, 2
    %v106 = vadd.f32 %v104, %v105
    %v107 = vrot.slane %v106, 1
    %v108 = vadd.f32 %v106, %v107
    %v109 = vmul.f32 %v18, %v18
    %v110 = vmul.f32 %v19, %v19
    %v111 = vmul.f32 %v20, %v20
    %v112 = vmul.f32 %v21, %v21
    %v113 = vmul.f32 %v22, %v22
    %v114 = vmul.f32 %v23, %v23
    %v115 = vmul.f32 %v24, %v24
    %v116 = vmul.f32 %v25, %v25
    %v117 = vmul.f32 %v26, %v26
    %v118 = vmul.f32 %v27, %v27
    %v119 = vmul.f32 %v28, %v28
    %v120 = vmul.f32 %v29, %v29
    %v121 = vmul.f32 %v30, %v30
    %v122 = vmul.f32 %v31, %v31
    %v123 = vmul.f32 %v32, %v32
    %v124 = vmul.f32 %v33, %v33
    %v125 = vsel %vm66, %v109, 0.0
    %v126 = vsel %vm66, %v110, 0.0
    %v127 = vadd.f32 %v125, %v126
    %v128 = vsel %vm66, %v111, 0.0
    %v129 = vadd.f32 %v127, %v128
    %v130 = vsel %vm66, %v112, 0.0
    %v131 = vadd.f32 %v129, %v130
    %v132 = vsel %vm66, %v113, 0.0
    %v133 = vadd.f32 %v131, %v132
    %v134 = vsel %vm66, %v114, 0.0
    %v135 = vadd.f32 %v133, %v134
    %v136 = vsel %vm66, %v115, 0.0
    %v137 = vadd.f32 %v135, %v136
    %v138 = vsel %vm66, %v116, 0.0
    %v139 = vadd.f32 %v137, %v138
    %v140 = vrot.slane %v139, 4
    %v141 = vadd.f32 %v139, %v140
    %v142 = vrot.slane %v141, 2
    %v143 = vadd.f32 %v141, %v142
    %v144 = vrot.slane %v143, 1
    %v145 = vadd.f32 %v143, %v144
    %v146 = vsel %vm66, %v117, 0.0
    %v147 = vsel %vm66, %v118, 0.0
    %v148 = vadd.f32 %v146, %v147
    %v149 = vsel %vm66, %v119, 0.0
    %v150 = vadd.f32 %v148, %v149
    %v151 = vsel %vm66, %v120, 0.0
    %v152 = vadd.f32 %v150, %v151
    %v153 = vsel %vm66, %v121, 0.0
    %v154 = vadd.f32 %v152, %v153
    %v155 = vsel %vm66, %v122, 0.0
    %v156 = vadd.f32 %v154, %v155
    %v157 = vsel %vm66, %v123, 0.0
    %v158 = vadd.f32 %v156, %v157
    %v159 = vsel %vm66, %v124, 0.0
    %v160 = vadd.f32 %v158, %v159
    %v161 = vrot.slane %v160, 4
    %v162 = vadd.f32 %v160, %v161
    %v163 = vrot.slane %v162, 2
    %v164 = vadd.f32 %v162, %v163
    %v165 = vrot.slane %v164, 1
    %v166 = vadd.f32 %v164, %v165
    %v167 = vmul.f32 %v34, %v34
    %v168 = vmul.f32 %v35, %v35
    %v169 = vmul.f32 %v36, %v36
    %v170 = vmul.f32 %v37, %v37
    %v171 = vmul.f32 %v38, %v38
    %v172 = vmul.f32 %v39, %v39
    %v173 = vmul.f32 %v40, %v40
    %v174 = vmul.f32 %v41, %v41
    %v175 = vmul.f32 %v42, %v42
    %v176 = vmul.f32 %v43, %v43
    %v177 = vmul.f32 %v44, %v44
    %v178 = vmul.f32 %v45, %v45
    %v179 = vmul.f32 %v46, %v46
    %v180 = vmul.f32 %v47, %v47
    %v181 = vmul.f32 %v48, %v48
    %v182 = vmul.f32 %v49, %v49
    %v183 = vsel %vm66, %v167, 0.0
    %v184 = vsel %vm66, %v168, 0.0
    %v185 = vadd.f32 %v183, %v184
    %v186 = vsel %vm66, %v169, 0.0
    %v187 = vadd.f32 %v185, %v186
    %v188 = vsel %vm66, %v170, 0.0
    %v189 = vadd.f32 %v187, %v188
    %v190 = vsel %vm66, %v171, 0.0
    %v191 = vadd.f32 %v189, %v190
    %v192 = vsel %vm66, %v172, 0.0
    %v193 = vadd.f32 %v191, %v192
    %v194 = vsel %vm66, %v173, 0.0
    %v195 = vadd.f32 %v193, %v194
    %v196 = vsel %vm66, %v174, 0.0
    %v197 = vadd.f32 %v195, %v196
    %v198 = vrot.slane %v197, 4
    %v199 = vadd.f32 %v197, %v198
    %v200 = vrot.slane %v199, 2
    %v201 = vadd.f32 %v199, %v200
    %v202 = vrot.slane %v201, 1
    %v203 = vadd.f32 %v201, %v202
    %v204 = vsel %vm66, %v175, 0.0
    %v205 = vsel %vm66, %v176, 0.0
    %v206 = vadd.f32 %v204, %v205
    %v207 = vsel %vm66, %v177, 0.0
    %v208 = vadd.f32 %v206, %v207
    %v209 = vsel %vm66, %v178, 0.0
    %v210 = vadd.f32 %v208, %v209
    %v211 = vsel %vm66, %v179, 0.0
    %v212 = vadd.f32 %v210, %v211
    %v213 = vsel %vm66, %v180, 0.0
    %v214 = vadd.f32 %v212, %v213
    %v215 = vsel %vm66, %v181, 0.0
    %v216 = vadd.f32 %v214, %v215
    %v217 = vsel %vm66, %v182, 0.0
    %v218 = vadd.f32 %v216, %v217
    %v219 = vrot.slane %v218, 4
    %v220 = vadd.f32 %v218, %v219
    %v221 = vrot.slane %v220, 2
    %v222 = vadd.f32 %v220, %v221
    %v223 = vrot.slane %v222, 1
    %v224 = vadd.f32 %v222, %v223
    %v225 = vmul.f32 %v145, %v203
    %v226 = vmul.f32 %v166, %v224
    %v227 = vmax.f32 %v225, 1e-12
    %v228 = vmax.f32 %v226, 1e-12
    %v229 = vrsqrt.pop %v227
    %v230 = vrsqrt.pop %v228
    %v231 = vmul.f32 %v87, %v229
    %v232 = vmul.f32 %v108, %v230
    %vm233 = vcmask 122880
    %234 = vst.msk [vmem:[#allocation2] sm:$0x1] %vm233, %v231
    %235 = vst.msk [vmem:[#allocation2 + $0x1] sm:$0x1] %vm233, %v232
    %v236 = vld [vmem:[%s2] sm:$0x1]
    %v237 = vld [vmem:[%s2 + $0x1] sm:$0x1]
    %v238 = vsub.f32 %v231, %v236
    %v239 = vsub.f32 %v232, %v237
    %v240 = vmul.f32 %v238, %v238
    %v241 = vmul.f32 %v239, %v239
    %242 = vst.msk [vmem:[#allocation4] sm:$0x1] %vm233, %v240
    %243 = vst.msk [vmem:[#allocation4 + $0x1] sm:$0x1] %vm233, %v241
    // Predicated region
    $region14: #{tpu_custom_call.1} parent=1 // pred_check
      _
    $region15: #{tpu_custom_call.1} parent=1 // pred_check_branch
      %245 = sbr.rel (0) target = $region17
    $region16: #{tpu_custom_call.1} parent=1 // pred_region
      %s247 = ssub.s32 32, 32
      %248 = vsyncadd [#allocation3], %s247
      %s249 = sshll.u32 [#allocation2], 4
      %s250 = int_to_ptr.vmem [resolvable:$true] %s249
      %255 = dma.vmem_to_hbm [thread:$0]  %s250, 32, %s3, [#allocation3], 16, 16, 1
    $region17: #{tpu_custom_call.1} parent=1 // pred_fallthru
      _
    // Predicated region
    $region18: #{tpu_custom_call.1} parent=1 // pred_check
      _
    $region19: #{tpu_custom_call.1} parent=1 // pred_check_branch
      %257 = sbr.rel (0) target = $region21
    $region20: #{tpu_custom_call.1} parent=1 // pred_region
      %s259 = ssub.s32 32, 32
      %260 = vsyncadd [#allocation5], %s259
      %s261 = sshll.u32 [#allocation4], 4
      %s262 = int_to_ptr.vmem [resolvable:$true] %s261
      %267 = dma.vmem_to_hbm [thread:$0]  %s262, 32, %s4, [#allocation5], 16, 16, 1
    $region21: #{tpu_custom_call.1} parent=1 // pred_fallthru
      _
    // Predicated region
    $region22: #{tpu_custom_call.1} parent=1 // pred_check
      _
    $region23: #{tpu_custom_call.1} parent=1 // pred_check_branch
      %269 = sbr.rel (0) target = $region25
    $region24: #{tpu_custom_call.1} parent=1 // pred_region
      %270 = dma.done [#allocation3], 32
    $region25: #{tpu_custom_call.1} parent=1 // pred_fallthru
      _
    // Predicated region
    $region26: #{tpu_custom_call.1} parent=1 // pred_check
      _
    $region27: #{tpu_custom_call.1} parent=1 // pred_check_branch
      %272 = sbr.rel (0) target = $region29
    $region28: #{tpu_custom_call.1} parent=1 // pred_region
      %273 = dma.done [#allocation5], 32
    $region29: #{tpu_custom_call.1} parent=1 // pred_fallthru
      _
    %274 = vsyncpa [#allocation3], 1
    %275 = vsyncpa [#allocation5], 1

</llo_original>
